<compile_context>
chip_gen: v7x
topology: tpu7x:2x2x1
jax: 0.10.0
libtpu: 0.0.40
codegen_flags: <defaults>
</compile_context>

<pallas_src>
import functools

import jax
import jax.numpy as jnp
from jax.experimental import pallas as pl
from jax.experimental.pallas import tpu as pltpu


def _round_up(v, m):
    return ((v + m - 1) // m) * m


def policy_fwd_kernel(x_ref, w1_ref, b1_ref, w2_ref, b2_ref, wm_ref, bm_ref,
                      mean_ref, *scratch):
    """One batch tile of the fused 2-hidden-layer tanh MLP policy head.

    Matmuls hit the MXU (f32 accumulation), tanh hits the EUP (bf16 on
    v6e/v7x when act_dtype=bf16); hidden activations round-trip through a
    single reused VMEM scratch buffer.
    """
    h1_scr = scratch[0]
    h2_scr = scratch[-1]          # same ref as h1_scr when only one buffer (h1 == h2)
    cdt = w1_ref.dtype            # matmul operand dtype (f32 or bf16)

    # layer 1: tanh(x @ W1 + b1); x is cast to the compute dtype in-kernel (free VPU op)
    z1 = jnp.dot(x_ref[...].astype(cdt), w1_ref[...],
                 preferred_element_type=jnp.float32) + b1_ref[...]
    h1_scr[...] = jnp.tanh(z1.astype(h1_scr.dtype))

    # layer 2: tanh(h1 @ W2 + b2); h1 is dead after the dot, so the store may reuse it
    z2 = jnp.dot(h1_scr[...].astype(cdt), w2_ref[...],
                 preferred_element_type=jnp.float32) + b2_ref[...]
    h2_scr[...] = jnp.tanh(z2.astype(h2_scr.dtype))

    # action-mean head (only kernel output, lane-sparse masked store is fine here)
    mean_ref[...] = (
        jnp.dot(h2_scr[...].astype(cdt), wm_ref[...],
                preferred_element_type=jnp.float32) + bm_ref[...]
    ).astype(mean_ref.dtype)


@functools.partial(
    jax.jit, static_argnames=("block_batch", "compute_dtype", "act_dtype"))
def policy_forward(x, w1, b1, w2, b2, wm, bm, log_std, *,
                   block_batch=4096, compute_dtype=jnp.bfloat16,
                   act_dtype=jnp.float32):
    """Returns (action_mean, action_log_std, action_std), all float32.

    x:  (batch, state_dim)            -- stays f32; cast to compute dtype in-kernel
    w1: (state_dim, H1), b1: (1, H1)
    w2: (H1, H2),        b2: (1, H2)
    wm: (H2, A),         bm: (1, A)
    log_std: (1, A)
    compute_dtype: matmul-operand dtype (bf16 is MXU-native on v5e/v6e/v7x)
    act_dtype:     tanh / hidden-scratch dtype (bf16 worthwhile on v6e/v7x only)
    """
    batch, state_dim = x.shape
    h1 = w1.shape[1]
    h2 = w2.shape[1]
    action_dim = wm.shape[1]

    # ---- batch tile selection -------------------------------------------------
    tb = batch if batch <= block_batch else block_batch
    # v7x megacore: make sure a large single-step grid splits into >=2 steps so
    # dimension_semantics=("parallel",) can spread the batch over both TCs.
    if batch > 1024 and pl.cdiv(batch, tb) == 1:
        tb = _round_up(pl.cdiv(batch, 2), 8)

    cbytes = jnp.dtype(compute_dtype).itemsize
    sbytes = jnp.dtype(act_dtype).itemsize

    def vmem_footprint(tb_):
        lane = 128
        x_buf = 2 * tb_ * _round_up(state_dim, lane) * 4        # f32 x, double-buffered, lane-padded
        out_buf = 2 * tb_ * _round_up(action_dim, lane) * 4     # f32 mean, double-buffered
        n_scr = 1 if h1 == h2 else 2
        scr = n_scr * tb_ * _round_up(max(h1, h2), lane) * sbytes
        wts = 2 * (_round_up(state_dim, 8) * _round_up(h1, lane)
                   + _round_up(h1, 8) * _round_up(h2, lane)
                   + _round_up(h2, 8) * _round_up(action_dim, lane)) * cbytes
        bias = 2 * 8 * (_round_up(h1, lane) + _round_up(h2, lane)
                        + _round_up(action_dim, lane)) * 4
        return x_buf + out_buf + scr + wts + bias

    # Clamp the tile so the per-step footprint fits every generation
    # (v7x physical VMEM = 64 MiB per TensorCore).
    budget = 56 << 20
    while tb > 8 and vmem_footprint(tb) > budget:
        tb = max(8, _round_up(tb // 2, 8))
    vmem_limit = max(32 << 20, min(vmem_footprint(tb) + (4 << 20), 64 << 20))

    grid = (pl.cdiv(batch, tb),)

    # Weights cast in the wrapper (tiny); biases stay f32 (added onto f32 dot output).
    w1c = w1.astype(compute_dtype)
    w2c = w2.astype(compute_dtype)
    wmc = wm.astype(compute_dtype)
    b1f = b1.astype(jnp.float32)
    b2f = b2.astype(jnp.float32)
    bmf = bm.astype(jnp.float32)

    # Single scratch buffer when the hidden widths match (layer-2 reuses layer-1's).
    if h1 == h2:
        scratch_shapes = [pltpu.VMEM((tb, h1), act_dtype)]
    else:
        scratch_shapes = [pltpu.VMEM((tb, h1), act_dtype),
                          pltpu.VMEM((tb, h2), act_dtype)]

    cost = pl.CostEstimate(
        flops=2 * batch * (state_dim * h1 + h1 * h2 + h2 * action_dim),
        transcendentals=batch * (h1 + h2),
        bytes_accessed=(batch * state_dim * 4
                        + (state_dim * h1 + h1 * h2 + h2 * action_dim) * cbytes
                        + (h1 + h2 + action_dim) * 4
                        + batch * action_dim * 4),
    )

    mean = pl.pallas_call(
        policy_fwd_kernel,
        out_shape=jax.ShapeDtypeStruct((batch, action_dim), jnp.float32),
        grid=grid,
        in_specs=[
            pl.BlockSpec((tb, state_dim), lambda i: (i, 0)),    # x tile (f32)
            pl.BlockSpec((state_dim, h1), lambda i: (0, 0)),    # W1 (VMEM-resident)
            pl.BlockSpec((1, h1),         lambda i: (0, 0)),    # b1
            pl.BlockSpec((h1, h2),        lambda i: (0, 0)),    # W2
            pl.BlockSpec((1, h2),         lambda i: (0, 0)),    # b2
            pl.BlockSpec((h2, action_dim), lambda i: (0, 0)),   # Wm
            pl.BlockSpec((1, action_dim),  lambda i: (0, 0)),   # bm
        ],
        out_specs=pl.BlockSpec((tb, action_dim), lambda i: (i, 0)),
        scratch_shapes=scratch_shapes,
        compiler_params=pltpu.CompilerParams(
            dimension_semantics=("parallel",),       # v7x: shard batch over 2 TCs
            vmem_limit_bytes=vmem_limit,             # v5e scoped default is only 16 MiB
        ),
        cost_estimate=cost,
    )(x, w1c, b1f, w2c, b2f, wmc, bmf)

    # x-independent outputs: exp once on (1, A), then broadcast (fused by XLA).
    log_std_f = log_std.astype(jnp.float32)
    action_log_std = jnp.broadcast_to(log_std_f, mean.shape)
    action_std = jnp.broadcast_to(jnp.exp(log_std_f), mean.shape)
    return mean, action_log_std, action_std


def default_dtypes():
    """bf16 matmul operands on every generation; bf16 tanh/scratch only where the
    VPU/EUP are bf16-capable (v6e / v7x). Falls back to f32 activations."""
    try:
        kind = jax.devices()[0].device_kind.lower()
    except Exception:
        kind = ""
    bf16_vpu = any(tag in kind for tag in ("v6", "v7", "7x"))
    return jnp.bfloat16, (jnp.bfloat16 if bf16_vpu else jnp.float32)


def init_policy_params(key, state_dim, action_dim, hidden_size=(128, 128),
                       log_std=0.0):
    """Parameter init mirroring the PyTorch module's shapes.

    nn.Linear(in, out) stores weight (out, in); we keep the transposed (in, out)
    layout for the kernel. action_mean weight is scaled by 0.1 and its bias
    zeroed, matching the module's __init__.
    """
    keys = jax.random.split(key, 2 * len(hidden_size) + 2)
    params = []
    last_dim = state_dim
    ki = 0
    for nh in hidden_size:
        bound = 1.0 / jnp.sqrt(jnp.float32(last_dim))
        w = jax.random.uniform(keys[ki], (last_dim, nh), jnp.float32, -bound, bound)
        b = jax.random.uniform(keys[ki + 1], (1, nh), jnp.float32, -bound, bound)
        params.extend([w, b])
        last_dim = nh
        ki += 2
    bound = 1.0 / jnp.sqrt(jnp.float32(last_dim))
    wm = 0.1 * jax.random.uniform(keys[ki], (last_dim, action_dim),
                                  jnp.float32, -bound, bound)
    bm = jnp.zeros((1, action_dim), jnp.float32)
    ls = jnp.full((1, action_dim), jnp.float32(log_std))
    params.extend([wm, bm, ls])
    return params


def policy_forward_ref(x, w1, b1, w2, b2, wm, bm, log_std):
    """Pure-JAX reference for correctness checking."""
    h = jnp.tanh(x @ w1 + b1)
    h = jnp.tanh(h @ w2 + b2)
    mean = h @ wm + bm
    ls = jnp.broadcast_to(log_std, mean.shape)
    return mean, ls, jnp.exp(ls)


# TODO(synk): non-tanh activations (relu/sigmoid/mish) and the Normal-distribution
# helpers (select_action / get_kl / get_log_prob / get_fim) are host-side utilities
# on top of forward() and are not ported to the kernel.

if __name__ == "__main__":
    key = jax.random.PRNGKey(0)
    k_x, k_p = jax.random.split(key)

    batch, state_dim, action_dim = 20, 16, 4
    hidden_size = (128, 128)

    x = jax.random.normal(k_x, (batch, state_dim), jnp.float32)
    w1, b1, w2, b2, wm, bm, log_std = init_policy_params(
        k_p, state_dim, action_dim, hidden_size=hidden_size, log_std=0.0)

    mean_r, ls_r, std_r = policy_forward_ref(x, w1, b1, w2, b2, wm, bm, log_std)

    # 1) Exact f32 path, single-step grid (tile == full small batch).
    mean, a_log_std, a_std = policy_forward(
        x, w1, b1, w2, b2, wm, bm, log_std,
        compute_dtype=jnp.float32, act_dtype=jnp.float32)
    jax.block_until_ready((mean, a_log_std, a_std))

    assert mean.shape == (batch, action_dim)
    assert a_log_std.shape == (batch, action_dim)
    assert a_std.shape == (batch, action_dim)
    assert jnp.allclose(mean, mean_r, atol=1e-5)
    assert jnp.allclose(a_log_std, ls_r, atol=1e-6)
    assert jnp.allclose(a_std, std_r, atol=1e-5)

    # 2) Fast path (bf16 matmul operands; bf16 tanh/scratch on v6e/v7x), small
    #    tile to exercise the multi-step grid and a partial final tile (20 % 8).
    cdt, adt = default_dtypes()
    mean_f, ls_f, std_f = policy_forward(
        x, w1, b1, w2, b2, wm, bm, log_std,
        block_batch=8, compute_dtype=cdt, act_dtype=adt)
    jax.block_until_ready((mean_f, ls_f, std_f))
    assert jnp.allclose(mean_f, mean_r, atol=3e-2, rtol=3e-2)
    assert jnp.allclose(ls_f, ls_r, atol=1e-6)
    assert jnp.allclose(std_f, std_r, atol=1e-5)

    print("KERNEL_OK")
</pallas_src>

<mosaic_0001>
module attributes {stable_mosaic.version = 11 : i64} {
  func.func @policy_fwd_kernel(%arg0: i32, %arg1: memref<20x16xf32, #tpu.memory_space<vmem>>, %arg2: memref<16x128xf32, #tpu.memory_space<vmem>>, %arg3: memref<1x128xf32, #tpu.memory_space<vmem>>, %arg4: memref<128x128xf32, #tpu.memory_space<vmem>>, %arg5: memref<1x128xf32, #tpu.memory_space<vmem>>, %arg6: memref<128x4xf32, #tpu.memory_space<vmem>>, %arg7: memref<1x4xf32, #tpu.memory_space<vmem>>, %arg8: memref<20x4xf32, #tpu.memory_space<vmem>>, %arg9: memref<20x128xf32, #tpu.memory_space<vmem>>) attributes {dimension_semantics = [#tpu.dimension_semantics<parallel>], iteration_bounds = array<i64: 1>, scalar_prefetch = 0 : i64, scratch_operands = 1 : i64, tpu.core_type = #tpu.core_type<tc>, window_params = [{transform_indices = @transform_0, window_bounds = array<i64: 20, 16>}, {pipeline_mode = #tpu.pipeline_mode<synchronous>, transform_indices = @transform_1, window_bounds = array<i64: 16, 128>}, {pipeline_mode = #tpu.pipeline_mode<synchronous>, transform_indices = @transform_2, window_bounds = array<i64: 1, 128>}, {pipeline_mode = #tpu.pipeline_mode<synchronous>, transform_indices = @transform_3, window_bounds = array<i64: 128, 128>}, {pipeline_mode = #tpu.pipeline_mode<synchronous>, transform_indices = @transform_4, window_bounds = array<i64: 1, 128>}, {pipeline_mode = #tpu.pipeline_mode<synchronous>, transform_indices = @transform_5, window_bounds = array<i64: 128, 4>}, {pipeline_mode = #tpu.pipeline_mode<synchronous>, transform_indices = @transform_6, window_bounds = array<i64: 1, 4>}, {transform_indices = @transform_7, window_bounds = array<i64: 20, 4>}]} {
    %c0 = arith.constant 0 : index
    %c0_0 = arith.constant 0 : index
    %0 = vector.load %arg1[%c0, %c0_0] : memref<20x16xf32, #tpu.memory_space<vmem>>, vector<20x16xf32>
    %c0_1 = arith.constant 0 : index
    %c0_2 = arith.constant 0 : index
    %1 = vector.load %arg2[%c0_1, %c0_2] : memref<16x128xf32, #tpu.memory_space<vmem>>, vector<16x128xf32>
    %cst = arith.constant dense<0.000000e+00> : vector<20x128xf32>
    %2 = tpu.matmul %0, %1, %cst {dimension_numbers = #tpu.dot_dimension_numbers<[1], [0], [0], [1], [0, 0, 1, 1], [], []>} : vector<20x16xf32>, vector<16x128xf32>, vector<20x128xf32> -> vector<20x128xf32>
    %c0_3 = arith.constant 0 : index
    %c0_4 = arith.constant 0 : index
    %3 = vector.load %arg3[%c0_3, %c0_4] : memref<1x128xf32, #tpu.memory_space<vmem>>, vector<1x128xf32>
    %4 = vector.broadcast %3 : vector<1x128xf32> to vector<20x128xf32>
    %5 = arith.addf %2, %4 : vector<20x128xf32>
    %6 = math.tanh %5 : vector<20x128xf32>
    %c0_5 = arith.constant 0 : index
    %c0_6 = arith.constant 0 : index
    %7 = vector.load %arg9[%c0_5, %c0_6] : memref<20x128xf32, #tpu.memory_space<vmem>>, vector<20x128xf32>
    tpu.vector_store %arg9[%c0_5, %c0_6], %6 {strides = array<i32>} : memref<20x128xf32, #tpu.memory_space<vmem>>, vector<20x128xf32>,
    %c0_7 = arith.constant 0 : index
    %c0_8 = arith.constant 0 : index
    %8 = vector.load %arg9[%c0_7, %c0_8] : memref<20x128xf32, #tpu.memory_space<vmem>>, vector<20x128xf32>
    %c0_9 = arith.constant 0 : index
    %c0_10 = arith.constant 0 : index
    %9 = vector.load %arg4[%c0_9, %c0_10] : memref<128x128xf32, #tpu.memory_space<vmem>>, vector<128x128xf32>
    %cst_11 = arith.constant dense<0.000000e+00> : vector<20x128xf32>
    %10 = tpu.matmul %8, %9, %cst_11 {dimension_numbers = #tpu.dot_dimension_numbers<[1], [0], [0], [1], [0, 0, 1, 1], [], []>} : vector<20x128xf32>, vector<128x128xf32>, vector<20x128xf32> -> vector<20x128xf32>
    %c0_12 = arith.constant 0 : index
    %c0_13 = arith.constant 0 : index
    %11 = vector.load %arg5[%c0_12, %c0_13] : memref<1x128xf32, #tpu.memory_space<vmem>>, vector<1x128xf32>
    %12 = vector.broadcast %11 : vector<1x128xf32> to vector<20x128xf32>
    %13 = arith.addf %10, %12 : vector<20x128xf32>
    %14 = math.tanh %13 : vector<20x128xf32>
    %c0_14 = arith.constant 0 : index
    %c0_15 = arith.constant 0 : index
    %15 = vector.load %arg9[%c0_14, %c0_15] : memref<20x128xf32, #tpu.memory_space<vmem>>, vector<20x128xf32>
    tpu.vector_store %arg9[%c0_14, %c0_15], %14 {strides = array<i32>} : memref<20x128xf32, #tpu.memory_space<vmem>>, vector<20x128xf32>,
    %c0_16 = arith.constant 0 : index
    %c0_17 = arith.constant 0 : index
    %16 = vector.load %arg9[%c0_16, %c0_17] : memref<20x128xf32, #tpu.memory_space<vmem>>, vector<20x128xf32>
    %c0_18 = arith.constant 0 : index
    %c0_19 = arith.constant 0 : index
    %17 = vector.load %arg6[%c0_18, %c0_19] : memref<128x4xf32, #tpu.memory_space<vmem>>, vector<128x4xf32>
    %cst_20 = arith.constant dense<0.000000e+00> : vector<20x4xf32>
    %18 = tpu.matmul %16, %17, %cst_20 {dimension_numbers = #tpu.dot_dimension_numbers<[1], [0], [0], [1], [0, 0, 1, 1], [], []>} : vector<20x128xf32>, vector<128x4xf32>, vector<20x4xf32> -> vector<20x4xf32>
    %c0_21 = arith.constant 0 : index
    %c0_22 = arith.constant 0 : index
    %19 = vector.load %arg7[%c0_21, %c0_22] : memref<1x4xf32, #tpu.memory_space<vmem>>, vector<1x4xf32>
    %20 = vector.broadcast %19 : vector<1x4xf32> to vector<20x4xf32>
    %21 = arith.addf %18, %20 : vector<20x4xf32>
    %c0_23 = arith.constant 0 : index
    %c0_24 = arith.constant 0 : index
    %22 = vector.load %arg8[%c0_23, %c0_24] : memref<20x4xf32, #tpu.memory_space<vmem>>, vector<20x4xf32>
    tpu.vector_store %arg8[%c0_23, %c0_24], %21 {strides = array<i32>} : memref<20x4xf32, #tpu.memory_space<vmem>>, vector<20x4xf32>,
    return
  }
  func.func @transform_0(%arg0: i32) -> (i32, i32) {
    %c0_i32 = arith.constant 0 : i32
    %c0_i32_0 = arith.constant 0 : i32
    return %arg0, %c0_i32 : i32, i32
  }
  func.func @transform_1(%arg0: i32) -> (i32, i32) {
    %c0_i32 = arith.constant 0 : i32
    %c0_i32_0 = arith.constant 0 : i32
    %c0_i32_1 = arith.constant 0 : i32
    return %c0_i32, %c0_i32_0 : i32, i32
  }
  func.func @transform_2(%arg0: i32) -> (i32, i32) {
    %c0_i32 = arith.constant 0 : i32
    %c0_i32_0 = arith.constant 0 : i32
    %c0_i32_1 = arith.constant 0 : i32
    return %c0_i32, %c0_i32_0 : i32, i32
  }
  func.func @transform_3(%arg0: i32) -> (i32, i32) {
    %c0_i32 = arith.constant 0 : i32
    %c0_i32_0 = arith.constant 0 : i32
    %c0_i32_1 = arith.constant 0 : i32
    return %c0_i32, %c0_i32_0 : i32, i32
  }
  func.func @transform_4(%arg0: i32) -> (i32, i32) {
    %c0_i32 = arith.constant 0 : i32
    %c0_i32_0 = arith.constant 0 : i32
    %c0_i32_1 = arith.constant 0 : i32
    return %c0_i32, %c0_i32_0 : i32, i32
  }
  func.func @transform_5(%arg0: i32) -> (i32, i32) {
    %c0_i32 = arith.constant 0 : i32
    %c0_i32_0 = arith.constant 0 : i32
    %c0_i32_1 = arith.constant 0 : i32
    return %c0_i32, %c0_i32_0 : i32, i32
  }
  func.func @transform_6(%arg0: i32) -> (i32, i32) {
    %c0_i32 = arith.constant 0 : i32
    %c0_i32_0 = arith.constant 0 : i32
    %c0_i32_1 = arith.constant 0 : i32
    return %c0_i32, %c0_i32_0 : i32, i32
  }
  func.func @transform_7(%arg0: i32) -> (i32, i32) {
    %c0_i32 = arith.constant 0 : i32
    %c0_i32_0 = arith.constant 0 : i32
    return %arg0, %c0_i32 : i32, i32
  }
}

</mosaic_0001>

<llo_original>
// kernel: policy_forward.1
$region0: #{policy_forward.1}
  #allocation0 [shape = 'u32[]', space=smem, size = 0x4, offset = 0x4, fixed_abs, tag = 'smem constant byte address 0x4 - core index']
  #allocation1 [shape = 'u32[144,128]{1,0:T(1,128)}', space=vmem, size = 0x12000, scoped, tag = 'internal scratch']
  #allocation2 [shape = 'f32[20,128]{1,0:T(8,128)}', space=vmem, size = 0x3000, scoped, tag = 'scratch operand']
  %s0 = inlined_call_operand.vmem [shape: f32[20,16], index: 0, kind: input, shape index: {}]
  %s1 = inlined_call_operand.vmem [shape: f32[16,128], index: 1, kind: input, shape index: {}]
  %s2 = inlined_call_operand.vmem [shape: f32[1,128], index: 2, kind: input, shape index: {}]
  %s3 = inlined_call_operand.vmem [shape: f32[128,128], index: 3, kind: input, shape index: {}]
  %s4 = inlined_call_operand.vmem [shape: f32[1,128], index: 4, kind: input, shape index: {}]
  %s5 = inlined_call_operand.vmem [shape: f32[128,4], index: 5, kind: input, shape index: {}]
  %s6 = inlined_call_operand.vmem [shape: f32[1,4], index: 6, kind: input, shape index: {}]
  %s7 = inlined_call_operand.vmem [shape: f32[20,4], index: 7, kind: output, shape index: {}]
  %s8 = sld [smem:[#allocation0]]
  $region38: #{policy_forward.1} parent=0
    _
  %s10 = ssub.s32 1, %s8
  %s11 = scalar_select 0, %s10, %s8
  // Predicated region
  $region2: #{policy_forward.1} parent=0 // pred_check
    _
  $region3: #{policy_forward.1} parent=0 // pred_check_branch
    %13 = sbr.rel (0) target = $region5
  $region4: #{policy_forward.1} parent=0 // pred_region
    _
  $region5: #{policy_forward.1} parent=0 // pred_fallthru
    _
  // Predicated region
  $region6: #{policy_forward.1} parent=0 // pred_check
    _
  $region7: #{policy_forward.1} parent=0 // pred_check_branch
    %15 = sbr.rel (0) target = $region9
  $region8: #{policy_forward.1} parent=0 // pred_region
    _
  $region9: #{policy_forward.1} parent=0 // pred_fallthru
    _
  // Predicated region
  $region10: #{policy_forward.1} parent=0 // pred_check
    _
  $region11: #{policy_forward.1} parent=0 // pred_check_branch
    %17 = sbr.rel (0) target = $region13
  $region12: #{policy_forward.1} parent=0 // pred_region
    _
  $region13: #{policy_forward.1} parent=0 // pred_fallthru
    _
  // Predicated region
  $region14: #{policy_forward.1} parent=0 // pred_check
    _
  $region15: #{policy_forward.1} parent=0 // pred_check_branch
    %19 = sbr.rel (0) target = $region17
  $region16: #{policy_forward.1} parent=0 // pred_region
    _
  $region17: #{policy_forward.1} parent=0 // pred_fallthru
    _
  // Predicated region
  $region18: #{policy_forward.1} parent=0 // pred_check
    _
  $region19: #{policy_forward.1} parent=0 // pred_check_branch
    %21 = sbr.rel (0) target = $region21
  $region20: #{policy_forward.1} parent=0 // pred_region
    _
  $region21: #{policy_forward.1} parent=0 // pred_fallthru
    _
  // Predicated region
  $region22: #{policy_forward.1} parent=0 // pred_check
    _
  $region23: #{policy_forward.1} parent=0 // pred_check_branch
    %23 = sbr.rel (0) target = $region25
  $region24: #{policy_forward.1} parent=0 // pred_region
    _
  $region25: #{policy_forward.1} parent=0 // pred_fallthru
    _
  // Predicated region
  $region26: #{policy_forward.1} parent=0 // pred_check
    _
  $region27: #{policy_forward.1} parent=0 // pred_check_branch
    %25 = sbr.rel (0) target = $region29
  $region28: #{policy_forward.1} parent=0 // pred_region
    _
  $region29: #{policy_forward.1} parent=0 // pred_fallthru
    _
  %v26 = vld [vmem:[%s0] sm:$0xff]
  %v27 = vld [vmem:[%s0 + $0x8] sm:$0xff]
  %v28 = vld [vmem:[%s0 + $0x10] sm:$0xf]
  %v29 = vld [vmem:[%s1] sm:$0xff]
  %v30 = vld [vmem:[%s1 + $0x8] sm:$0xff]
  %v31 = vld [vmem:[%s2] sm:$0x1]
  %v33 = vlaneseq
  %v34 = vshrl.u32 %v33, 7
  %v35 = vsub.s32 0, %v34
  %v36 = vrot.slane %v31, %v35
  %vm38 = vcmask 130048
  %v40 = vsel %vm38, %v26, 0
  %v43 = vsel %vm38, %v27, 0
  %v46 = vsel %vm38, %v28, 0
  %48 = vmatprep.subr.mxu0 0.0
  %49 = vmatpush1.msra.mxu0 %v29
  %50 = vmatprep.subr.mxu0 0.0
  %51 = vmatpush1.msra.mxu0 %v30
  %52 = vmatprep.subr.mxu0 0.0
  %53 = vmatpush1.msra.mxu0 0.0
  %54 = vmatprep.subr.mxu0 0.0
  %55 = vmatpush1.msra.mxu0 0.0
  %56 = vmatprep.subr.mxu0 0.0
  %57 = vmatpush1.msra.mxu0 0.0
  %58 = vmatprep.subr.mxu0 0.0
  %59 = vmatpush1.msra.mxu0 0.0
  %60 = vmatprep.subr.mxu0 0.0
  %61 = vmatpush1.msra.mxu0 0.0
  %62 = vmatprep.subr.mxu0 0.0
  %63 = vmatpush1.msra.mxu0 0.0
  %64 = vmatprep.subr.mxu0 0.0
  %65 = vmatpush1.msra.mxu0 0.0
  %66 = vmatprep.subr.mxu0 0.0
  %67 = vmatpush1.msra.mxu0 0.0
  %68 = vmatprep.subr.mxu0 0.0
  %69 = vmatpush1.msra.mxu0 0.0
  %70 = vmatprep.subr.mxu0 0.0
  %71 = vmatpush1.msra.mxu0 0.0
  %72 = vmatprep.subr.mxu0 0.0
  %73 = vmatpush1.msra.mxu0 0.0
  %74 = vmatprep.subr.mxu0 0.0
  %75 = vmatpush1.msra.mxu0 0.0
  %76 = vmatprep.subr.mxu0 0.0
  %77 = vmatpush1.msra.mxu0 0.0
  %78 = vmatprep.subr.mxu0 0.0
  %79 = vmatpush1.msra.mxu0 0.0
  %80 = vmatprep.subr.mxu0 0.0
  %81 = vmatpush1.msra.mxu0 0.0
  %82 = vmatprep.subr.mxu0 0.0
  %83 = vmatpush1.msra.mxu0 0.0
  %84 = vmatprep.subr.mxu0 0.0
  %85 = vmatpush1.msra.mxu0 0.0
  %86 = vmatprep.subr.mxu0 0.0
  %87 = vmatpush1.msra.mxu0 0.0
  %88 = vmatprep.subr.mxu0 0.0
  %89 = vmatpush1.msra.mxu0 0.0
  %90 = vmatprep.subr.mxu0 0.0
  %91 = vmatpush1.msra.mxu0 0.0
  %92 = vmatprep.subr.mxu0 0.0
  %93 = vmatpush1.msra.mxu0 0.0
  %94 = vmatprep.subr.mxu0 0.0
  %95 = vmatpush1.msra.mxu0 0.0
  %96 = vmatprep.subr.mxu0 0.0
  %97 = vmatpush1.msra.mxu0 0.0
  %98 = vmatprep.subr.mxu0 0.0
  %99 = vmatpush1.msra.mxu0 0.0
  %100 = vmatprep.subr.mxu0 0.0
  %101 = vmatpush1.msra.mxu0 0.0
  %102 = vmatprep.subr.mxu0 0.0
  %103 = vmatpush1.msra.mxu0 0.0
  %104 = vmatprep.subr.mxu0 0.0
  %105 = vmatpush1.msra.mxu0 0.0
  %106 = vmatprep.subr.mxu0 0.0
  %107 = vmatpush1.msra.mxu0 0.0
  %108 = vmatprep.subr.mxu0 0.0
  %109 = vmatpush1.msra.mxu0 0.0
  %110 = vmatprep.subr.mxu0 0.0
  %111 = vmatpush1.msra.mxu0 0.0
  %112 = vmatprep.mubr.f32.mxu0 0.0
  %113 = vmatmul.mubr.f32.gmra.mrb[0].mxu0 %v40
  %v114 = vpop.f32.mrb[0].mxu0
  %v115 = vadd.f32 %v36, %v114
  %v116 = vpop.f32.mrb[0].mxu0
  %117 = vmatprep.mubr.f32.mxu0 0.0
  %118 = vmatmul.mubr.f32.gmra.mrb[0].mxu0 %v43
  %v119 = vpop.f32.mrb[0].mxu0
  %v120 = vadd.f32 %v36, %v119
  %v121 = vpop.f32.mrb[0].mxu0
  %122 = vmatprep.mubr.f32.mxu0 0.0
  %123 = vmatmul.mubr.f32.gmra.mrb[0].mxu0 %v46
  %v124 = vpop.f32.mrb[0].mxu0
  %v125 = vadd.f32 %v36, %v124
  %v126 = vpop.f32.mrb[0].mxu0
  %127 = vdwg.mxu0
  %v128 = vtanh.pop %v115
  %v129 = vtanh.pop %v120
  %v130 = vtanh.pop %v125
  %131 = vst [vmem:[#allocation2] sm:$0xff] %v128
  %132 = vst [vmem:[#allocation2 + $0x8] sm:$0xff] %v129
  %133 = vst [vmem:[#allocation2 + $0x10] sm:$0xf] %v130
  %v134 = vld [vmem:[#allocation2] sm:$0xff]
  %v135 = vld [vmem:[#allocation2 + $0x8] sm:$0xff]
  %v136 = vld [vmem:[#allocation2 + $0x10] sm:$0xf]
  %v137 = vld [vmem:[%s3] sm:$0xff]
  %v138 = vld [vmem:[%s3 + $0x8] sm:$0xff]
  %v139 = vld [vmem:[%s3 + $0x10] sm:$0xff]
  %v140 = vld [vmem:[%s3 + $0x18] sm:$0xff]
  %v141 = vld [vmem:[%s3 + $0x20] sm:$0xff]
  %v142 = vld [vmem:[%s3 + $0x28] sm:$0xff]
  %v143 = vld [vmem:[%s3 + $0x30] sm:$0xff]
  %v144 = vld [vmem:[%s3 + $0x38] sm:$0xff]
  %v145 = vld [vmem:[%s3 + $0x40] sm:$0xff]
  %v146 = vld [vmem:[%s3 + $0x48] sm:$0xff]
  %v147 = vld [vmem:[%s3 + $0x50] sm:$0xff]
  %v148 = vld [vmem:[%s3 + $0x58] sm:$0xff]
  %v149 = vld [vmem:[%s3 + $0x60] sm:$0xff]
  %v150 = vld [vmem:[%s3 + $0x68] sm:$0xff]
  %v151 = vld [vmem:[%s3 + $0x70] sm:$0xff]
  %v152 = vld [vmem:[%s3 + $0x78] sm:$0xff]
  %v153 = vld [vmem:[%s4] sm:$0x1]
  %v155 = vlaneseq
  %v156 = vshrl.u32 %v155, 7
  %v157 = vsub.s32 0, %v156
  %v158 = vrot.slane %v153, %v157
  %160 = vmatprep.subr.mxu0 0.0
  %161 = vmatpush1.msra.mxu0 %v137
  %162 = vmatprep.subr.mxu0 0.0
  %163 = vmatpush1.msra.mxu0 %v138
  %164 = vmatprep.subr.mxu0 0.0
  %165 = vmatpush1.msra.mxu0 %v139
  %166 = vmatprep.subr.mxu0 0.0
  %167 = vmatpush1.msra.mxu0 %v140
  %168 = vmatprep.subr.mxu0 0.0
  %169 = vmatpush1.msra.mxu0 %v141
  %170 = vmatprep.subr.mxu0 0.0
  %171 = vmatpush1.msra.mxu0 %v142
  %172 = vmatprep.subr.mxu0 0.0
  %173 = vmatpush1.msra.mxu0 %v143
  %174 = vmatprep.subr.mxu0 0.0
  %175 = vmatpush1.msra.mxu0 %v144
  %176 = vmatprep.subr.mxu0 0.0
  %177 = vmatpush1.msra.mxu0 %v145
  %178 = vmatprep.subr.mxu0 0.0
  %179 = vmatpush1.msra.mxu0 %v146
  %180 = vmatprep.subr.mxu0 0.0
  %181 = vmatpush1.msra.mxu0 %v147
  %182 = vmatprep.subr.mxu0 0.0
  %183 = vmatpush1.msra.mxu0 %v148
  %184 = vmatprep.subr.mxu0 0.0
  %185 = vmatpush1.msra.mxu0 %v149
  %186 = vmatprep.subr.mxu0 0.0
  %187 = vmatpush1.msra.mxu0 %v150
  %188 = vmatprep.subr.mxu0 0.0
  %189 = vmatpush1.msra.mxu0 %v151
  %190 = vmatprep.subr.mxu0 0.0
  %191 = vmatpush1.msra.mxu0 %v152
  %192 = vmatprep.subr.mxu0 0.0
  %193 = vmatpush1.msra.mxu0 0.0
  %194 = vmatprep.subr.mxu0 0.0
  %195 = vmatpush1.msra.mxu0 0.0
  %196 = vmatprep.subr.mxu0 0.0
  %197 = vmatpush1.msra.mxu0 0.0
  %198 = vmatprep.subr.mxu0 0.0
  %199 = vmatpush1.msra.mxu0 0.0
  %200 = vmatprep.subr.mxu0 0.0
  %201 = vmatpush1.msra.mxu0 0.0
  %202 = vmatprep.subr.mxu0 0.0
  %203 = vmatpush1.msra.mxu0 0.0
  %204 = vmatprep.subr.mxu0 0.0
  %205 = vmatpush1.msra.mxu0 0.0
  %206 = vmatprep.subr.mxu0 0.0
  %207 = vmatpush1.msra.mxu0 0.0
  %208 = vmatprep.subr.mxu0 0.0
  %209 = vmatpush1.msra.mxu0 0.0
  %210 = vmatprep.subr.mxu0 0.0
  %211 = vmatpush1.msra.mxu0 0.0
  %212 = vmatprep.subr.mxu0 0.0
  %213 = vmatpush1.msra.mxu0 0.0
  %214 = vmatprep.subr.mxu0 0.0
  %215 = vmatpush1.msra.mxu0 0.0
  %216 = vmatprep.subr.mxu0 0.0
  %217 = vmatpush1.msra.mxu0 0.0
  %218 = vmatprep.subr.mxu0 0.0
  %219 = vmatpush1.msra.mxu0 0.0
  %220 = vmatprep.subr.mxu0 0.0
  %221 = vmatpush1.msra.mxu0 0.0
  %222 = vmatprep.subr.mxu0 0.0
  %223 = vmatpush1.msra.mxu0 0.0
  %224 = vmatprep.mubr.f32.mxu0 0.0
  %225 = vmatmul.mubr.f32.gmra.mrb[0].mxu0 %v134
  %v226 = vpop.f32.mrb[0].mxu0
  %v227 = vadd.f32 %v158, %v226
  %v228 = vpop.f32.mrb[0].mxu0
  %229 = vmatprep.mubr.f32.mxu0 0.0
  %230 = vmatmul.mubr.f32.gmra.mrb[0].mxu0 %v135
  %v231 = vpop.f32.mrb[0].mxu0
  %v232 = vadd.f32 %v158, %v231
  %v233 = vpop.f32.mrb[0].mxu0
  %234 = vmatprep.mubr.f32.mxu0 0.0
  %235 = vmatmul.mubr.f32.gmra.mrb[0].mxu0 %v136
  %v236 = vpop.f32.mrb[0].mxu0
  %v237 = vadd.f32 %v158, %v236
  %v238 = vpop.f32.mrb[0].mxu0
  %239 = vdwg.mxu0
  %v240 = vtanh.pop %v227
  %v241 = vtanh.pop %v232
  %v242 = vtanh.pop %v237
  %243 = vst [vmem:[#allocation2] sm:$0xff] %v240
  %244 = vst [vmem:[#allocation2 + $0x8] sm:$0xff] %v241
  %245 = vst [vmem:[#allocation2 + $0x10] sm:$0xf] %v242
  %v246 = vld [vmem:[#allocation2] sm:$0xff]
  %v247 = vld [vmem:[#allocation2 + $0x8] sm:$0xff]
  %v248 = vld [vmem:[#allocation2 + $0x10] sm:$0xf]
  %v249 = vld [vmem:[%s5] sm:$0xff]
  %v250 = vld [vmem:[%s5 + $0x8] sm:$0xff]
  %v251 = vld [vmem:[%s5 + $0x10] sm:$0xff]
  %v252 = vld [vmem:[%s5 + $0x18] sm:$0xff]
  %v253 = vld [vmem:[%s5 + $0x20] sm:$0xff]
  %v254 = vld [vmem:[%s5 + $0x28] sm:$0xff]
  %v255 = vld [vmem:[%s5 + $0x30] sm:$0xff]
  %v256 = vld [vmem:[%s5 + $0x38] sm:$0xff]
  %v257 = vld [vmem:[%s5 + $0x40] sm:$0xff]
  %v258 = vld [vmem:[%s5 + $0x48] sm:$0xff]
  %v259 = vld [vmem:[%s5 + $0x50] sm:$0xff]
  %v260 = vld [vmem:[%s5 + $0x58] sm:$0xff]
  %v261 = vld [vmem:[%s5 + $0x60] sm:$0xff]
  %v262 = vld [vmem:[%s5 + $0x68] sm:$0xff]
  %v263 = vld [vmem:[%s5 + $0x70] sm:$0xff]
  %v264 = vld [vmem:[%s5 + $0x78] sm:$0xff]
  %v265 = vld [vmem:[%s6] sm:$0x1]
  %v267 = vlaneseq
  %v268 = vshrl.u32 %v267, 7
  %v269 = vsub.s32 0, %v268
  %v270 = vrot.slane %v265, %v269
  %272 = vmatprep.subr.mxu0 0.0
  %273 = vmatpush1.msra.mxu0 %v249
  %274 = vmatprep.subr.mxu0 0.0
  %275 = vmatpush1.msra.mxu0 %v250
  %276 = vmatprep.subr.mxu0 0.0
  %277 = vmatpush1.msra.mxu0 %v251
  %278 = vmatprep.subr.mxu0 0.0
  %279 = vmatpush1.msra.mxu0 %v252
  %280 = vmatprep.subr.mxu0 0.0
  %281 = vmatpush1.msra.mxu0 %v253
  %282 = vmatprep.subr.mxu0 0.0
  %283 = vmatpush1.msra.mxu0 %v254
  %284 = vmatprep.subr.mxu0 0.0
  %285 = vmatpush1.msra.mxu0 %v255
  %286 = vmatprep.subr.mxu0 0.0
  %287 = vmatpush1.msra.mxu0 %v256
  %288 = vmatprep.subr.mxu0 0.0
  %289 = vmatpush1.msra.mxu0 %v257
  %290 = vmatprep.subr.mxu0 0.0
  %291 = vmatpush1.msra.mxu0 %v258
  %292 = vmatprep.subr.mxu0 0.0
  %293 = vmatpush1.msra.mxu0 %v259
  %294 = vmatprep.subr.mxu0 0.0
  %295 = vmatpush1.msra.mxu0 %v260
  %296 = vmatprep.subr.mxu0 0.0
  %297 = vmatpush1.msra.mxu0 %v261
  %298 = vmatprep.subr.mxu0 0.0
  %299 = vmatpush1.msra.mxu0 %v262
  %300 = vmatprep.subr.mxu0 0.0
  %301 = vmatpush1.msra.mxu0 %v263
  %302 = vmatprep.subr.mxu0 0.0
  %303 = vmatpush1.msra.mxu0 %v264
  %304 = vmatprep.subr.mxu0 0.0
  %305 = vmatpush1.msra.mxu0 0.0
  %306 = vmatprep.subr.mxu0 0.0
  %307 = vmatpush1.msra.mxu0 0.0
  %308 = vmatprep.subr.mxu0 0.0
  %309 = vmatpush1.msra.mxu0 0.0
  %310 = vmatprep.subr.mxu0 0.0
  %311 = vmatpush1.msra.mxu0 0.0
  %312 = vmatprep.subr.mxu0 0.0
  %313 = vmatpush1.msra.mxu0 0.0
  %314 = vmatprep.subr.mxu0 0.0
  %315 = vmatpush1.msra.mxu0 0.0
  %316 = vmatprep.subr.mxu0 0.0
  %317 = vmatpush1.msra.mxu0 0.0
  %318 = vmatprep.subr.mxu0 0.0
  %319 = vmatpush1.msra.mxu0 0.0
  %320 = vmatprep.subr.mxu0 0.0
  %321 = vmatpush1.msra.mxu0 0.0
  %322 = vmatprep.subr.mxu0 0.0
  %323 = vmatpush1.msra.mxu0 0.0
  %324 = vmatprep.subr.mxu0 0.0
  %325 = vmatpush1.msra.mxu0 0.0
  %326 = vmatprep.subr.mxu0 0.0
  %327 = vmatpush1.msra.mxu0 0.0
  %328 = vmatprep.subr.mxu0 0.0
  %329 = vmatpush1.msra.mxu0 0.0
  %330 = vmatprep.subr.mxu0 0.0
  %331 = vmatpush1.msra.mxu0 0.0
  %332 = vmatprep.subr.mxu0 0.0
  %333 = vmatpush1.msra.mxu0 0.0
  %334 = vmatprep.subr.mxu0 0.0
  %335 = vmatpush1.msra.mxu0 0.0
  %336 = vmatprep.mubr.f32.mxu0 0.0
  %337 = vmatmul.mubr.f32.gmra.mrb[0].mxu0 %v246
  %v338 = vpop.f32.mrb[0].mxu0
  %v339 = vadd.f32 %v270, %v338
  %v340 = vpop.f32.mrb[0].mxu0
  %341 = vmatprep.mubr.f32.mxu0 0.0
  %342 = vmatmul.mubr.f32.gmra.mrb[0].mxu0 %v247
  %v343 = vpop.f32.mrb[0].mxu0
  %v344 = vadd.f32 %v270, %v343
  %v345 = vpop.f32.mrb[0].mxu0
  %346 = vmatprep.mubr.f32.mxu0 0.0
  %347 = vmatmul.mubr.f32.gmra.mrb[0].mxu0 %v248
  %v348 = vpop.f32.mrb[0].mxu0
  %v349 = vadd.f32 %v270, %v348
  %v350 = vpop.f32.mrb[0].mxu0
  %351 = vdwg.mxu0
  %vm352 = vcmask 31744
  %353 = vst.msk [vmem:[%s7] sm:$0xff] %vm352, %v339
  %354 = vst.msk [vmem:[%s7 + $0x8] sm:$0xff] %vm352, %v344
  %vm355 = vcmask 27648
  %356 = vst.msk [vmem:[%s7 + $0x10] sm:$0xf] %vm355, %v349
  // Predicated region
  $region30: #{policy_forward.1} parent=0 // pred_check
    _
  $region31: #{policy_forward.1} parent=0 // pred_check_branch
    %358 = sbr.rel (0) target = $region33
  $region32: #{policy_forward.1} parent=0 // pred_region
    _
  $region33: #{policy_forward.1} parent=0 // pred_fallthru
    _
  // Predicated region
  $region34: #{policy_forward.1} parent=0 // pred_check
    _
  $region35: #{policy_forward.1} parent=0 // pred_check_branch
    %360 = sbr.rel (0) target = $region37
  $region36: #{policy_forward.1} parent=0 // pred_region
    _
  $region37: #{policy_forward.1} parent=0 // pred_fallthru
    _

</llo_original>
